<compile_context>
chip_gen: v7x
topology: tpu7x:2x2x1
jax: 0.10.0
libtpu: 0.0.40
codegen_flags: <defaults>
</compile_context>

<pallas_src>
import jax
import jax.numpy as jnp
from jax import lax
from jax.experimental import pallas as pl
from jax.experimental.pallas import tpu as pltpu


def mlp_kernel(x_ref,
               w1_ref, b1_ref,
               w2_ref, b2_ref,
               w3_ref, b3_ref,
               w4_ref, b4_ref,
               oT_ref):
    """One batch tile of the MLP, computed transposed (batch on the lane axis).

    x_ref  : [TILE_B, in_dim]  f32  (straight from HBM, no wrapper pre-pass)
    wN_ref : [out_N, in_N]     f32  (PyTorch layout, VMEM-resident)
    bN_ref : [out_N, 1]        f32
    oT_ref : [out_dim, TILE_B] f32  (lane-dense store)
    """
    x = x_ref[...]

    # linear1 + relu: contract on the feature axis -> h is [64, TILE_B]
    h = lax.dot_general(w1_ref[...], x, (((1,), (1,)), ((), ())),
                        preferred_element_type=jnp.float32) + b1_ref[...]
    h = jnp.maximum(h, 0.0)

    # linear2 + relu
    h = jnp.dot(w2_ref[...], h, preferred_element_type=jnp.float32) + b2_ref[...]
    h = jnp.maximum(h, 0.0)

    # linear3 + relu
    h = jnp.dot(w3_ref[...], h, preferred_element_type=jnp.float32) + b3_ref[...]
    h = jnp.maximum(h, 0.0)

    # linear4 + sigmoid (exact f32; exp goes to the EUP slot)
    z = jnp.dot(w4_ref[...], h, preferred_element_type=jnp.float32) + b4_ref[...]
    oT_ref[...] = 1.0 / (1.0 + jnp.exp(-z))


def _resident_spec(shape):
    """Full-array block with a constant block index -> VMEM-resident across steps."""
    ndim = len(shape)
    return pl.BlockSpec(shape, lambda i, _nd=ndim: (0,) * _nd)


def mlp_forward(x, params, *, tile_b=2048):
    """x: [B, in_dim] float32 -> [B, out_dim] float32."""
    B, in_dim = x.shape
    out_dim = params["w4"].shape[0]

    # --- batch tile selection ------------------------------------------------
    # Lane-aligned (multiple of 128), capped at 8192 (v7x VMEM headroom),
    # never larger than the lane-rounded batch.
    b128 = 128 * pl.cdiv(B, 128)
    tile = min(128 * pl.cdiv(min(tile_b, 8192), 128), b128)
    # v7x megacore: make sure the grid has >= 2 steps when the per-step tile
    # would still be a reasonable (>=256-lane) size, so both TCs get work.
    if pl.cdiv(b128, tile) < 2 and b128 >= 512:
        tile = 128 * pl.cdiv(b128 // 2, 128)
    num_tiles = pl.cdiv(B, tile)
    # Ragged tail blocks are handled by Pallas (masked partial stores); the
    # garbage lanes never feed a batch-axis reduction, so no wrapper jnp.pad.

    w1, b1 = params["w1"], params["b1"]
    w2, b2 = params["w2"], params["b2"]
    w3, b3 = params["w3"], params["b3"]
    w4, b4 = params["w4"], params["b4"]

    in_specs = [
        pl.BlockSpec((tile, in_dim), lambda i: (i, 0)),   # x tile, pipelined over batch
        _resident_spec(w1.shape), _resident_spec(b1.shape),
        _resident_spec(w2.shape), _resident_spec(b2.shape),
        _resident_spec(w3.shape), _resident_spec(b3.shape),
        _resident_spec(w4.shape), _resident_spec(b4.shape),
    ]
    out_specs = pl.BlockSpec((out_dim, tile), lambda i: (0, i))

    param_bytes = 4 * sum(int(p.size) for p in params.values())
    flops = 2 * B * (in_dim * 64 + 64 * 32 + 32 * 16 + 16 * out_dim)
    cost = pl.CostEstimate(
        flops=int(flops),
        transcendentals=int(B * out_dim),
        bytes_accessed=int(4 * B * (in_dim + out_dim) + param_bytes),
    )

    outT = pl.pallas_call(
        mlp_kernel,
        grid=(num_tiles,),
        in_specs=in_specs,
        out_specs=out_specs,
        out_shape=jax.ShapeDtypeStruct((out_dim, B), jnp.float32),
        compiler_params=pltpu.CompilerParams(
            dimension_semantics=("parallel",)),
        cost_estimate=cost,
    )(x, w1, b1, w2, b2, w3, b3, w4, b4)

    # [out_dim, B] lane-dense -> [B, out_dim]; for out_dim == 1 this is a free reshape.
    return outT.T


def init_params(key, input_dim, output_dim):
    """nn.Linear-style uniform(-1/sqrt(fan_in), 1/sqrt(fan_in)), PyTorch [out, in] layout."""
    dims = [(input_dim, 64), (64, 32), (32, 16), (16, output_dim)]
    params = {}
    for i, (fan_in, fan_out) in enumerate(dims, start=1):
        key, kw, kb = jax.random.split(key, 3)
        bound = 1.0 / jnp.sqrt(float(fan_in))
        params[f"w{i}"] = jax.random.uniform(
            kw, (fan_out, fan_in), jnp.float32, minval=-bound, maxval=bound)
        params[f"b{i}"] = jax.random.uniform(
            kb, (fan_out, 1), jnp.float32, minval=-bound, maxval=bound)
    return params


def reference_forward(x, params):
    """Pure-JAX f32 reference matching the PyTorch module semantics."""
    h = jnp.maximum(x @ params["w1"].T + params["b1"][:, 0], 0.0)
    h = jnp.maximum(h @ params["w2"].T + params["b2"][:, 0], 0.0)
    h = jnp.maximum(h @ params["w3"].T + params["b3"][:, 0], 0.0)
    return jax.nn.sigmoid(h @ params["w4"].T + params["b4"][:, 0])


if __name__ == "__main__":
    input_dim = 30    # breast-cancer dataset feature count
    output_dim = 1
    batch = 512       # heuristic splits this into 2 x 256-lane tiles (megacore path)

    key = jax.random.PRNGKey(0)
    key, kx = jax.random.split(key)
    x = jax.random.normal(kx, (batch, input_dim), jnp.float32)
    params = init_params(key, input_dim, output_dim)

    fwd = jax.jit(lambda xb: mlp_forward(xb, params))
    out = jax.block_until_ready(fwd(x))

    ref = reference_forward(x, params)
    assert out.shape == (batch, output_dim), out.shape
    max_err = float(jnp.max(jnp.abs(out - ref)))
    assert max_err < 1e-3, f"max abs err {max_err}"

    print("KERNEL_OK")
</pallas_src>

<mosaic_0001>
module attributes {stable_mosaic.version = 11 : i64} {
  func.func @mlp_kernel(%arg0: i32, %arg1: memref<256x30xf32, #tpu.memory_space<vmem>>, %arg2: memref<64x30xf32, #tpu.memory_space<vmem>>, %arg3: memref<64x1xf32, #tpu.memory_space<vmem>>, %arg4: memref<32x64xf32, #tpu.memory_space<vmem>>, %arg5: memref<32x1xf32, #tpu.memory_space<vmem>>, %arg6: memref<16x32xf32, #tpu.memory_space<vmem>>, %arg7: memref<16x1xf32, #tpu.memory_space<vmem>>, %arg8: memref<1x16xf32, #tpu.memory_space<vmem>>, %arg9: memref<1x1xf32, #tpu.memory_space<vmem>>, %arg10: memref<1x256xf32, #tpu.memory_space<vmem>>) attributes {dimension_semantics = [#tpu.dimension_semantics<parallel>], iteration_bounds = array<i64: 2>, scalar_prefetch = 0 : i64, scratch_operands = 0 : i64, tpu.core_type = #tpu.core_type<tc>, window_params = [{transform_indices = @transform_0, window_bounds = array<i64: 256, 30>}, {pipeline_mode = #tpu.pipeline_mode<synchronous>, transform_indices = @transform_1, window_bounds = array<i64: 64, 30>}, {pipeline_mode = #tpu.pipeline_mode<synchronous>, transform_indices = @transform_2, window_bounds = array<i64: 64, 1>}, {pipeline_mode = #tpu.pipeline_mode<synchronous>, transform_indices = @transform_3, window_bounds = array<i64: 32, 64>}, {pipeline_mode = #tpu.pipeline_mode<synchronous>, transform_indices = @transform_4, window_bounds = array<i64: 32, 1>}, {pipeline_mode = #tpu.pipeline_mode<synchronous>, transform_indices = @transform_5, window_bounds = array<i64: 16, 32>}, {pipeline_mode = #tpu.pipeline_mode<synchronous>, transform_indices = @transform_6, window_bounds = array<i64: 16, 1>}, {pipeline_mode = #tpu.pipeline_mode<synchronous>, transform_indices = @transform_7, window_bounds = array<i64: 1, 16>}, {pipeline_mode = #tpu.pipeline_mode<synchronous>, transform_indices = @transform_8, window_bounds = array<i64: 1, 1>}, {transform_indices = @transform_9, window_bounds = array<i64: 1, 256>}]} {
    %c0 = arith.constant 0 : index
    %c0_0 = arith.constant 0 : index
    %0 = vector.load %arg1[%c0, %c0_0] : memref<256x30xf32, #tpu.memory_space<vmem>>, vector<256x30xf32>
    %c0_1 = arith.constant 0 : index
    %c0_2 = arith.constant 0 : index
    %1 = vector.load %arg2[%c0_1, %c0_2] : memref<64x30xf32, #tpu.memory_space<vmem>>, vector<64x30xf32>
    %cst = arith.constant dense<0.000000e+00> : vector<64x256xf32>
    %2 = tpu.matmul %1, %0, %cst {dimension_numbers = #tpu.dot_dimension_numbers<[1], [1], [0], [0], [0, 0, 1, 0], [], []>} : vector<64x30xf32>, vector<256x30xf32>, vector<64x256xf32> -> vector<64x256xf32>
    %c0_3 = arith.constant 0 : index
    %c0_4 = arith.constant 0 : index
    %3 = vector.load %arg3[%c0_3, %c0_4] : memref<64x1xf32, #tpu.memory_space<vmem>>, vector<64x1xf32>
    %4 = vector.broadcast %3 : vector<64x1xf32> to vector<64x256xf32>
    %5 = arith.addf %2, %4 : vector<64x256xf32>
    %cst_5 = arith.constant 0.000000e+00 : f32
    %6 = vector.broadcast %cst_5 : f32 to vector<64x256xf32>
    %7 = arith.maximumf %5, %6 : vector<64x256xf32>
    %c0_6 = arith.constant 0 : index
    %c0_7 = arith.constant 0 : index
    %8 = vector.load %arg4[%c0_6, %c0_7] : memref<32x64xf32, #tpu.memory_space<vmem>>, vector<32x64xf32>
    %cst_8 = arith.constant dense<0.000000e+00> : vector<32x256xf32>
    %9 = tpu.matmul %8, %7, %cst_8 {dimension_numbers = #tpu.dot_dimension_numbers<[1], [0], [0], [1], [0, 0, 1, 1], [], []>} : vector<32x64xf32>, vector<64x256xf32>, vector<32x256xf32> -> vector<32x256xf32>
    %c0_9 = arith.constant 0 : index
    %c0_10 = arith.constant 0 : index
    %10 = vector.load %arg5[%c0_9, %c0_10] : memref<32x1xf32, #tpu.memory_space<vmem>>, vector<32x1xf32>
    %11 = vector.broadcast %10 : vector<32x1xf32> to vector<32x256xf32>
    %12 = arith.addf %9, %11 : vector<32x256xf32>
    %cst_11 = arith.constant 0.000000e+00 : f32
    %13 = vector.broadcast %cst_11 : f32 to vector<32x256xf32>
    %14 = arith.maximumf %12, %13 : vector<32x256xf32>
    %c0_12 = arith.constant 0 : index
    %c0_13 = arith.constant 0 : index
    %15 = vector.load %arg6[%c0_12, %c0_13] : memref<16x32xf32, #tpu.memory_space<vmem>>, vector<16x32xf32>
    %cst_14 = arith.constant dense<0.000000e+00> : vector<16x256xf32>
    %16 = tpu.matmul %15, %14, %cst_14 {dimension_numbers = #tpu.dot_dimension_numbers<[1], [0], [0], [1], [0, 0, 1, 1], [], []>} : vector<16x32xf32>, vector<32x256xf32>, vector<16x256xf32> -> vector<16x256xf32>
    %c0_15 = arith.constant 0 : index
    %c0_16 = arith.constant 0 : index
    %17 = vector.load %arg7[%c0_15, %c0_16] : memref<16x1xf32, #tpu.memory_space<vmem>>, vector<16x1xf32>
    %18 = vector.broadcast %17 : vector<16x1xf32> to vector<16x256xf32>
    %19 = arith.addf %16, %18 : vector<16x256xf32>
    %cst_17 = arith.constant 0.000000e+00 : f32
    %20 = vector.broadcast %cst_17 : f32 to vector<16x256xf32>
    %21 = arith.maximumf %19, %20 : vector<16x256xf32>
    %c0_18 = arith.constant 0 : index
    %c0_19 = arith.constant 0 : index
    %22 = vector.load %arg8[%c0_18, %c0_19] : memref<1x16xf32, #tpu.memory_space<vmem>>, vector<1x16xf32>
    %cst_20 = arith.constant dense<0.000000e+00> : vector<1x256xf32>
    %23 = tpu.matmul %22, %21, %cst_20 {dimension_numbers = #tpu.dot_dimension_numbers<[1], [0], [0], [1], [0, 0, 1, 1], [], []>} : vector<1x16xf32>, vector<16x256xf32>, vector<1x256xf32> -> vector<1x256xf32>
    %c0_21 = arith.constant 0 : index
    %c0_22 = arith.constant 0 : index
    %24 = vector.load %arg9[%c0_21, %c0_22] : memref<1x1xf32, #tpu.memory_space<vmem>>, vector<1x1xf32>
    %25 = vector.broadcast %24 : vector<1x1xf32> to vector<1x256xf32>
    %26 = arith.addf %23, %25 : vector<1x256xf32>
    %cst_23 = arith.constant 0.000000e+00 : f32
    %27 = vector.broadcast %cst_23 : f32 to vector<1x256xf32>
    %28 = arith.subf %27, %26 : vector<1x256xf32>
    %29 = math.exp %28 : vector<1x256xf32>
    %cst_24 = arith.constant 1.000000e+00 : f32
    %30 = vector.broadcast %cst_24 : f32 to vector<1x256xf32>
    %31 = arith.addf %30, %29 : vector<1x256xf32>
    %cst_25 = arith.constant 1.000000e+00 : f32
    %32 = vector.broadcast %cst_25 : f32 to vector<1x256xf32>
    %33 = arith.divf %32, %31 : vector<1x256xf32>
    %c0_26 = arith.constant 0 : index
    %c0_27 = arith.constant 0 : index
    %34 = vector.load %arg10[%c0_26, %c0_27] : memref<1x256xf32, #tpu.memory_space<vmem>>, vector<1x256xf32>
    tpu.vector_store %arg10[%c0_26, %c0_27], %33 {strides = array<i32>} : memref<1x256xf32, #tpu.memory_space<vmem>>, vector<1x256xf32>,
    return
  }
  func.func @transform_0(%arg0: i32) -> (i32, i32) {
    %c0_i32 = arith.constant 0 : i32
    %c0_i32_0 = arith.constant 0 : i32
    return %arg0, %c0_i32 : i32, i32
  }
  func.func @transform_1(%arg0: i32) -> (i32, i32) {
    %c0_i32 = arith.constant 0 : i32
    %c0_i32_0 = arith.constant 0 : i32
    %c0_i32_1 = arith.constant 0 : i32
    return %c0_i32, %c0_i32_0 : i32, i32
  }
  func.func @transform_2(%arg0: i32) -> (i32, i32) {
    %c0_i32 = arith.constant 0 : i32
    %c0_i32_0 = arith.constant 0 : i32
    %c0_i32_1 = arith.constant 0 : i32
    return %c0_i32, %c0_i32_0 : i32, i32
  }
  func.func @transform_3(%arg0: i32) -> (i32, i32) {
    %c0_i32 = arith.constant 0 : i32
    %c0_i32_0 = arith.constant 0 : i32
    %c0_i32_1 = arith.constant 0 : i32
    return %c0_i32, %c0_i32_0 : i32, i32
  }
  func.func @transform_4(%arg0: i32) -> (i32, i32) {
    %c0_i32 = arith.constant 0 : i32
    %c0_i32_0 = arith.constant 0 : i32
    %c0_i32_1 = arith.constant 0 : i32
    return %c0_i32, %c0_i32_0 : i32, i32
  }
  func.func @transform_5(%arg0: i32) -> (i32, i32) {
    %c0_i32 = arith.constant 0 : i32
    %c0_i32_0 = arith.constant 0 : i32
    %c0_i32_1 = arith.constant 0 : i32
    return %c0_i32, %c0_i32_0 : i32, i32
  }
  func.func @transform_6(%arg0: i32) -> (i32, i32) {
    %c0_i32 = arith.constant 0 : i32
    %c0_i32_0 = arith.constant 0 : i32
    %c0_i32_1 = arith.constant 0 : i32
    return %c0_i32, %c0_i32_0 : i32, i32
  }
  func.func @transform_7(%arg0: i32) -> (i32, i32) {
    %c0_i32 = arith.constant 0 : i32
    %c0_i32_0 = arith.constant 0 : i32
    %c0_i32_1 = arith.constant 0 : i32
    return %c0_i32, %c0_i32_0 : i32, i32
  }
  func.func @transform_8(%arg0: i32) -> (i32, i32) {
    %c0_i32 = arith.constant 0 : i32
    %c0_i32_0 = arith.constant 0 : i32
    %c0_i32_1 = arith.constant 0 : i32
    return %c0_i32, %c0_i32_0 : i32, i32
  }
  func.func @transform_9(%arg0: i32) -> (i32, i32) {
    %c0_i32 = arith.constant 0 : i32
    %c0_i32_0 = arith.constant 0 : i32
    return %c0_i32, %arg0 : i32, i32
  }
}

</mosaic_0001>

<llo_original>
// kernel: _lambda_.1
$region0: #{_lambda_.1}
  #allocation0 [shape = 'u32[]', space=smem, size = 0x4, offset = 0x4, fixed_abs, tag = 'smem constant byte address 0x4 - core index']
  #allocation1 [shape = 'u32[144,128]{1,0:T(1,128)}', space=vmem, size = 0x12000, scoped, tag = 'internal scratch']
  #allocation2 [shape = 'f32[1,1]{1,0:T(1,128)S(1)}', space=vmem, size = 0x200, scoped, tag = 'scoped memory for _lambda_.1']
  %s0 = inlined_call_operand.vmem [shape: f32[512,30], index: 0, kind: input, shape index: {}]
  %s1 = inlined_call_operand.vmem [shape: f32[64,30], index: 1, kind: input, shape index: {}]
  %s2 = inlined_call_operand.vmem [shape: f32[64,1], index: 2, kind: input, shape index: {}]
  %s3 = inlined_call_operand.vmem [shape: f32[32,64], index: 3, kind: input, shape index: {}]
  %s4 = inlined_call_operand.vmem [shape: f32[32,1], index: 4, kind: input, shape index: {}]
  %s5 = inlined_call_operand.vmem [shape: f32[16,32], index: 5, kind: input, shape index: {}]
  %s6 = inlined_call_operand.vmem [shape: f32[16,1], index: 6, kind: input, shape index: {}]
  %s7 = inlined_call_operand.vmem [shape: f32[1,16], index: 7, kind: input, shape index: {}]
  %s8 = inlined_call_operand.<no memory space> [shape: f32[1,1], index: 8, kind: input, shape index: {}]
  %s9 = inlined_call_operand.hbm [shape: f32[1,512], index: 9, kind: output, shape index: {}]
  %s10 = sld [smem:[#allocation0]]
  $region69: #{_lambda_.1} parent=0
    _
  %s12 = ssub.s32 1, %s10
  %s13 = scalar_select 0, %s12, %s10
  %v14 = vstv %s8
  %15 = vst [vmem:[#allocation2] sm:$0x1] %v14
  $region1: #{_lambda_.1} parent=0
    #allocation3 [shape = 'u8[2048]{0}', space=vmem, size = 0x800, scoped, tag = 'output window, operand 0']
    #allocation4 [shape = 's32[2]{0}', space=sflag, size = 0x8, scoped, tag = 'scoped memory for _lambda_.1']
    %16 = vsyncpa [#allocation4], 0
    %s17 = scalar_lea.sflag [#allocation4], 1
    %18 = vsyncpa %s17, 0
    loop: start=0, step=1, limit=4
    $region2: #{_lambda_.1} parent=1 // loop_pre_header
      _
    $region3: #{_lambda_.1} parent=1 // loop_header
      %s20 = sphi 0, %s24
      %p21 = scmp.ge.s32.totalorder %s20, 4
      %s30 = sphi 0, %s32
      %s33 = sphi 0, %s30
      %s34 = sphi 0, %s33
      %s50 = sphi 0, %s34
      %s54 = sphi 0, %s54
      %s56 = sphi 0, %s54
      %s57 = sphi 0, %s56
      %s71 = sphi 0, %s57
      %s75 = sphi 0, %s75
      %s77 = sphi 0, %s75
      %s78 = sphi 0, %s77
      %s92 = sphi 0, %s78
      %s96 = sphi 0, %s96
      %s98 = sphi 0, %s96
      %s99 = sphi 0, %s98
      %s113 = sphi 0, %s99
      %s117 = sphi 0, %s117
      %s119 = sphi 0, %s117
      %s120 = sphi 0, %s119
      %s134 = sphi 0, %s120
      %s138 = sphi 0, %s138
      %s140 = sphi 0, %s138
      %s141 = sphi 0, %s140
      %s155 = sphi 0, %s141
      %s159 = sphi 0, %s159
      %s161 = sphi 0, %s159
      %s162 = sphi 0, %s161
      %s176 = sphi 0, %s162
      %s180 = sphi 0, %s180
      %s182 = sphi 0, %s180
      %s183 = sphi 0, %s182
      %s197 = sphi 0, %s183
      %s201 = sphi 0, %s201
      %s203 = sphi 0, %s201
      %s204 = sphi 0, %s203
      %s218 = sphi 0, %s204
      %s224 = sphi 0, %s226
      %s227 = sphi 0, %s224
      %s228 = sphi 0, %s227
      %s244 = sphi 0, %s228
    $region4: #{_lambda_.1} parent=1 // loop_header_branch
      %23 = sbr.rel (%p21) target = $region8
    $region5: #{_lambda_.1} parent=1 // loop_body
      %s25 = ssub.s32 %s20, 1
      %s26 = ssub.s32 %s20, 2
      %s27 = sadd.s32 %s20, 1
      %s28 = ssub.s32 %s20, %s27
      %p29 = scmp.eq.s32.totalorder %s28, 0
      %s31 = sadd.s32 %s30, 1
      %s32 = scalar_select %p29, %s30, %s31
      %p35 = pneg %p29
      %p36 = scmp.eq.s32.totalorder %s20, 1
      %p37 = por %p35, %p36
      %p38 = scmp.ne.s32.totalorder %s30, %s33
      %p39 = scmp.eq.s32.totalorder %s20, 0
      %p40 = por %p38, %p39
      %p41 = scmp.ne.s32.totalorder %s30, %s33
      %p42 = scmp.eq.s32.totalorder %s25, 1
      %p43 = por %p41, %p42
      %p44 = scmp.ne.s32.totalorder %s33, %s34
      %p45 = scmp.eq.s32.totalorder %s25, 0
      %p46 = por %p44, %p45
      %p47 = scmp.ne.s32.totalorder %s33, %s34
      %p48 = scmp.eq.s32.totalorder %s26, 1
      %p49 = por %p47, %p48
      %p51 = scmp.ne.s32.totalorder %s34, %s50
      %p52 = scmp.eq.s32.totalorder %s26, 0
      %p53 = por %p51, %p52
      %s55 = sadd.s32 %s54, 1
      %p58 = scmp.eq.s32.totalorder %s20, 1
      %p59 = scmp.ne.s32.totalorder %s54, %s56
      %p60 = scmp.eq.s32.totalorder %s20, 0
      %p61 = por %p59, %p60
      %p62 = scmp.ne.s32.totalorder %s54, %s56
      %p63 = scmp.eq.s32.totalorder %s25, 1
      %p64 = por %p62, %p63
      %p65 = scmp.ne.s32.totalorder %s56, %s57
      %p66 = scmp.eq.s32.totalorder %s25, 0
      %p67 = por %p65, %p66
      %p68 = scmp.ne.s32.totalorder %s56, %s57
      %p69 = scmp.eq.s32.totalorder %s26, 1
      %p70 = por %p68, %p69
      %p72 = scmp.ne.s32.totalorder %s57, %s71
      %p73 = scmp.eq.s32.totalorder %s26, 0
      %p74 = por %p72, %p73
      %s76 = sadd.s32 %s75, 1
      %p79 = scmp.eq.s32.totalorder %s20, 1
      %p80 = scmp.ne.s32.totalorder %s75, %s77
      %p81 = scmp.eq.s32.totalorder %s20, 0
      %p82 = por %p80, %p81
      %p83 = scmp.ne.s32.totalorder %s75, %s77
      %p84 = scmp.eq.s32.totalorder %s25, 1
      %p85 = por %p83, %p84
      %p86 = scmp.ne.s32.totalorder %s77, %s78
      %p87 = scmp.eq.s32.totalorder %s25, 0
      %p88 = por %p86, %p87
      %p89 = scmp.ne.s32.totalorder %s77, %s78
      %p90 = scmp.eq.s32.totalorder %s26, 1
      %p91 = por %p89, %p90
      %p93 = scmp.ne.s32.totalorder %s78, %s92
      %p94 = scmp.eq.s32.totalorder %s26, 0
      %p95 = por %p93, %p94
      %s97 = sadd.s32 %s96, 1
      %p100 = scmp.eq.s32.totalorder %s20, 1
      %p101 = scmp.ne.s32.totalorder %s96, %s98
      %p102 = scmp.eq.s32.totalorder %s20, 0
      %p103 = por %p101, %p102
      %p104 = scmp.ne.s32.totalorder %s96, %s98
      %p105 = scmp.eq.s32.totalorder %s25, 1
      %p106 = por %p104, %p105
      %p107 = scmp.ne.s32.totalorder %s98, %s99
      %p108 = scmp.eq.s32.totalorder %s25, 0
      %p109 = por %p107, %p108
      %p110 = scmp.ne.s32.totalorder %s98, %s99
      %p111 = scmp.eq.s32.totalorder %s26, 1
      %p112 = por %p110, %p111
      %p114 = scmp.ne.s32.totalorder %s99, %s113
      %p115 = scmp.eq.s32.totalorder %s26, 0
      %p116 = por %p114, %p115
      %s118 = sadd.s32 %s117, 1
      %p121 = scmp.eq.s32.totalorder %s20, 1
      %p122 = scmp.ne.s32.totalorder %s117, %s119
      %p123 = scmp.eq.s32.totalorder %s20, 0
      %p124 = por %p122, %p123
      %p125 = scmp.ne.s32.totalorder %s117, %s119
      %p126 = scmp.eq.s32.totalorder %s25, 1
      %p127 = por %p125, %p126
      %p128 = scmp.ne.s32.totalorder %s119, %s120
      %p129 = scmp.eq.s32.totalorder %s25, 0
      %p130 = por %p128, %p129
      %p131 = scmp.ne.s32.totalorder %s119, %s120
      %p132 = scmp.eq.s32.totalorder %s26, 1
      %p133 = por %p131, %p132
      %p135 = scmp.ne.s32.totalorder %s120, %s134
      %p136 = scmp.eq.s32.totalorder %s26, 0
      %p137 = por %p135, %p136
      %s139 = sadd.s32 %s138, 1
      %p142 = scmp.eq.s32.totalorder %s20, 1
      %p143 = scmp.ne.s32.totalorder %s138, %s140
      %p144 = scmp.eq.s32.totalorder %s20, 0
      %p145 = por %p143, %p144
      %p146 = scmp.ne.s32.totalorder %s138, %s140
      %p147 = scmp.eq.s32.totalorder %s25, 1
      %p148 = por %p146, %p147
      %p149 = scmp.ne.s32.totalorder %s140, %s141
      %p150 = scmp.eq.s32.totalorder %s25, 0
      %p151 = por %p149, %p150
      %p152 = scmp.ne.s32.totalorder %s140, %s141
      %p153 = scmp.eq.s32.totalorder %s26, 1
      %p154 = por %p152, %p153
      %p156 = scmp.ne.s32.totalorder %s141, %s155
      %p157 = scmp.eq.s32.totalorder %s26, 0
      %p158 = por %p156, %p157
      %s160 = sadd.s32 %s159, 1
      %p163 = scmp.eq.s32.totalorder %s20, 1
      %p164 = scmp.ne.s32.totalorder %s159, %s161
      %p165 = scmp.eq.s32.totalorder %s20, 0
      %p166 = por %p164, %p165
      %p167 = scmp.ne.s32.totalorder %s159, %s161
      %p168 = scmp.eq.s32.totalorder %s25, 1
      %p169 = por %p167, %p168
      %p170 = scmp.ne.s32.totalorder %s161, %s162
      %p171 = scmp.eq.s32.totalorder %s25, 0
      %p172 = por %p170, %p171
      %p173 = scmp.ne.s32.totalorder %s161, %s162
      %p174 = scmp.eq.s32.totalorder %s26, 1
      %p175 = por %p173, %p174
      %p177 = scmp.ne.s32.totalorder %s162, %s176
      %p178 = scmp.eq.s32.totalorder %s26, 0
      %p179 = por %p177, %p178
      %s181 = sadd.s32 %s180, 1
      %p184 = scmp.eq.s32.totalorder %s20, 1
      %p185 = scmp.ne.s32.totalorder %s180, %s182
      %p186 = scmp.eq.s32.totalorder %s20, 0
      %p187 = por %p185, %p186
      %p188 = scmp.ne.s32.totalorder %s180, %s182
      %p189 = scmp.eq.s32.totalorder %s25, 1
      %p190 = por %p188, %p189
      %p191 = scmp.ne.s32.totalorder %s182, %s183
      %p192 = scmp.eq.s32.totalorder %s25, 0
      %p193 = por %p191, %p192
      %p194 = scmp.ne.s32.totalorder %s182, %s183
      %p195 = scmp.eq.s32.totalorder %s26, 1
      %p196 = por %p194, %p195
      %p198 = scmp.ne.s32.totalorder %s183, %s197
      %p199 = scmp.eq.s32.totalorder %s26, 0
      %p200 = por %p198, %p199
      %s202 = sadd.s32 %s201, 1
      %p205 = scmp.eq.s32.totalorder %s20, 1
      %p206 = scmp.ne.s32.totalorder %s201, %s203
      %p207 = scmp.eq.s32.totalorder %s20, 0
      %p208 = por %p206, %p207
      %p209 = scmp.ne.s32.totalorder %s201, %s203
      %p210 = scmp.eq.s32.totalorder %s25, 1
      %p211 = por %p209, %p210
      %p212 = scmp.ne.s32.totalorder %s203, %s204
      %p213 = scmp.eq.s32.totalorder %s25, 0
      %p214 = por %p212, %p213
      %p215 = scmp.ne.s32.totalorder %s203, %s204
      %p216 = scmp.eq.s32.totalorder %s26, 1
      %p217 = por %p215, %p216
      %p219 = scmp.ne.s32.totalorder %s204, %s218
      %p220 = scmp.eq.s32.totalorder %s26, 0
      %p221 = por %p219, %p220
      %s222 = ssub.s32 %s20, %s27
      %p223 = scmp.eq.s32.totalorder %s222, 0
      %s225 = sadd.s32 %s224, 1
      %s226 = scalar_select %p223, %s224, %s225
      %p229 = pneg %p223
      %p230 = scmp.eq.s32.totalorder %s20, 1
      %p231 = por %p229, %p230
      %p232 = scmp.ne.s32.totalorder %s224, %s227
      %p233 = scmp.eq.s32.totalorder %s20, 0
      %p234 = por %p232, %p233
      %p235 = scmp.ne.s32.totalorder %s224, %s227
      %p236 = scmp.eq.s32.totalorder %s25, 1
      %p237 = por %p235, %p236
      %p238 = scmp.ne.s32.totalorder %s227, %s228
      %p239 = scmp.eq.s32.totalorder %s25, 0
      %p240 = por %p238, %p239
      %p241 = scmp.ne.s32.totalorder %s227, %s228
      %p242 = scmp.eq.s32.totalorder %s26, 1
      %p243 = por %p241, %p242
      %p245 = scmp.ne.s32.totalorder %s228, %s244
      %p246 = scmp.eq.s32.totalorder %s26, 0
      %p247 = por %p245, %p246
      %p248 = scmp.le.s32.totalorder 1, %s20
      %p249 = scmp.lt.s32.totalorder %s20, 3
      %p250 = pnand %p248, %p249
      %p251 = pneg %p250
      // Predicated region
      $region9: #{_lambda_.1} parent=5 // pred_check
        _
      $region10: #{_lambda_.1} parent=5 // pred_check_branch
        %253 = sbr.rel (%p250) target = $region12
      $region11: #{_lambda_.1} parent=5 // pred_region
        %s254 = ssub.s32 %s20, 1
        // Predicated region
        $region13: #{_lambda_.1} parent=11 // pred_check
          %p255 = pneg %p67
        $region14: #{_lambda_.1} parent=11 // pred_check_branch
          %257 = sbr.rel (%p255) target = $region16
        $region15: #{_lambda_.1} parent=11 // pred_region
          _
        $region16: #{_lambda_.1} parent=11 // pred_fallthru
          _
        // Predicated region
        $region17: #{_lambda_.1} parent=11 // pred_check
          %p258 = pneg %p88
        $region18: #{_lambda_.1} parent=11 // pred_check_branch
          %260 = sbr.rel (%p258) target = $region20
        $region19: #{_lambda_.1} parent=11 // pred_region
          _
        $region20: #{_lambda_.1} parent=11 // pred_fallthru
          _
        // Predicated region
        $region21: #{_lambda_.1} parent=11 // pred_check
          %p261 = pneg %p109
        $region22: #{_lambda_.1} parent=11 // pred_check_branch
          %263 = sbr.rel (%p261) target = $region24
        $region23: #{_lambda_.1} parent=11 // pred_region
          _
        $region24: #{_lambda_.1} parent=11 // pred_fallthru
          _
        // Predicated region
        $region25: #{_lambda_.1} parent=11 // pred_check
          %p264 = pneg %p130
        $region26: #{_lambda_.1} parent=11 // pred_check_branch
          %266 = sbr.rel (%p264) target = $region28
        $region27: #{_lambda_.1} parent=11 // pred_region
          _
        $region28: #{_lambda_.1} parent=11 // pred_fallthru
          _
        // Predicated region
        $region29: #{_lambda_.1} parent=11 // pred_check
          %p267 = pneg %p151
        $region30: #{_lambda_.1} parent=11 // pred_check_branch
          %269 = sbr.rel (%p267) target = $region32
        $region31: #{_lambda_.1} parent=11 // pred_region
          _
        $region32: #{_lambda_.1} parent=11 // pred_fallthru
          _
        // Predicated region
        $region33: #{_lambda_.1} parent=11 // pred_check
          %p270 = pneg %p172
        $region34: #{_lambda_.1} parent=11 // pred_check_branch
          %272 = sbr.rel (%p270) target = $region36
        $region35: #{_lambda_.1} parent=11 // pred_region
          _
        $region36: #{_lambda_.1} parent=11 // pred_fallthru
          _
        // Predicated region
        $region37: #{_lambda_.1} parent=11 // pred_check
          %p273 = pneg %p193
        $region38: #{_lambda_.1} parent=11 // pred_check_branch
          %275 = sbr.rel (%p273) target = $region40
        $region39: #{_lambda_.1} parent=11 // pred_region
          _
        $region40: #{_lambda_.1} parent=11 // pred_fallthru
          _
        // Predicated region
        $region41: #{_lambda_.1} parent=11 // pred_check
          %p276 = pneg %p214
        $region42: #{_lambda_.1} parent=11 // pred_check_branch
          %278 = sbr.rel (%p276) target = $region44
        $region43: #{_lambda_.1} parent=11 // pred_region
          _
        $region44: #{_lambda_.1} parent=11 // pred_fallthru
          _
      $region12: #{_lambda_.1} parent=5 // pred_fallthru
        _
      %p279 = scmp.lt.s32.totalorder %s20, 2
      // Predicated region
      $region45: #{_lambda_.1} parent=5 // pred_check
        %p280 = pneg %p279
      $region46: #{_lambda_.1} parent=5 // pred_check_branch
        %282 = sbr.rel (%p280) target = $region48
      $region47: #{_lambda_.1} parent=5 // pred_region
        // Predicated region
        $region49: #{_lambda_.1} parent=47 // pred_check
          %p283 = pneg %p40
        $region50: #{_lambda_.1} parent=47 // pred_check_branch
          %285 = sbr.rel (%p283) target = $region52
        $region51: #{_lambda_.1} parent=47 // pred_region
          %s286 = smul.u32 32, %s20
          %p287 = scmp.lt.s32.totalorder %s286, 63
          %s288 = scalar_select %p287, %s286, 63
          %s289 = smul.addr %s288, 8
          %s290 = scalar_lea.vmem %s0, %s289
          %s291 = smul.u32 32, %s20
        $region52: #{_lambda_.1} parent=47 // pred_fallthru
          _
      $region48: #{_lambda_.1} parent=5 // pred_fallthru
        _
      %p292 = scmp.le.s32.totalorder 1, %s20
      %p293 = scmp.lt.s32.totalorder %s20, 3
      %p294 = pnand %p292, %p293
      %p295 = pneg %p294
      // Predicated region
      $region53: #{_lambda_.1} parent=5 // pred_check
        _
      $region54: #{_lambda_.1} parent=5 // pred_check_branch
        %297 = sbr.rel (%p294) target = $region56
      $region55: #{_lambda_.1} parent=5 // pred_region
        %s298 = ssub.s32 %s20, 1
        %s299 = smul.u32 32, %s25
        %p300 = scmp.lt.s32.totalorder %s299, 63
        %s301 = scalar_select %p300, %s299, 63
        %s302 = smul.addr %s301, 8
        %s303 = scalar_lea.vmem %s0, %s302
        %p304 = pneg %p46
        %p305 = pneg %p43
        %p306 = pneg %p67
        %p307 = pneg %p64
        %p308 = pneg %p88
        %p309 = pneg %p85
        %p310 = pneg %p109
        %p311 = pneg %p106
        %p312 = pneg %p130
        %p313 = pneg %p127
        %p314 = pneg %p151
        %p315 = pneg %p148
        %p316 = pneg %p172
        %p317 = pneg %p169
        %p318 = pneg %p193
        %p319 = pneg %p190
        %p320 = pneg %p214
        %p321 = pneg %p211
        %p322 = pneg %p240
        %p323 = pneg %p237
        %s324 = sand.u32 %s227, 1
        %s325 = scalar_lea.sflag [#allocation4], %s324
        %s326 = sand.u32 %s227, 1
        %s327 = smul.addr %s326, 2
        %s328 = scalar_lea.vmem [#allocation3], %s327
        %s329 = smul.u32 32, %s25
        %p330 = scmp.lt.s32.totalorder %s329, 63
        %s331 = scalar_select %p330, %s329, 63
        %s332 = smul.addr %s331, 8
        %s333 = scalar_lea.vmem %s0, %s332
        %s334 = smul.u32 32, %s25
        %s335 = smul.u32 2, %s25
        %v336 = vld [vmem:[%s333] sm:$0xff]
        %v337 = vld [vmem:[%s333 + $0x8] sm:$0xff]
        %v338 = vld [vmem:[%s333 + $0x10] sm:$0xff]
        %v339 = vld [vmem:[%s333 + $0x18] sm:$0xff]
        %v340 = vld [vmem:[%s333 + $0x20] sm:$0xff]
        %v341 = vld [vmem:[%s333 + $0x28] sm:$0xff]
        %v342 = vld [vmem:[%s333 + $0x30] sm:$0xff]
        %v343 = vld [vmem:[%s333 + $0x38] sm:$0xff]
        %v344 = vld [vmem:[%s333 + $0x40] sm:$0xff]
        %v345 = vld [vmem:[%s333 + $0x48] sm:$0xff]
        %v346 = vld [vmem:[%s333 + $0x50] sm:$0xff]
        %v347 = vld [vmem:[%s333 + $0x58] sm:$0xff]
        %v348 = vld [vmem:[%s333 + $0x60] sm:$0xff]
        %v349 = vld [vmem:[%s333 + $0x68] sm:$0xff]
        %v350 = vld [vmem:[%s333 + $0x70] sm:$0xff]
        %v351 = vld [vmem:[%s333 + $0x78] sm:$0xff]
        %v352 = vld [vmem:[%s333 + $0x80] sm:$0xff]
        %v353 = vld [vmem:[%s333 + $0x88] sm:$0xff]
        %v354 = vld [vmem:[%s333 + $0x90] sm:$0xff]
        %v355 = vld [vmem:[%s333 + $0x98] sm:$0xff]
        %v356 = vld [vmem:[%s333 + $0xa0] sm:$0xff]
        %v357 = vld [vmem:[%s333 + $0xa8] sm:$0xff]
        %v358 = vld [vmem:[%s333 + $0xb0] sm:$0xff]
        %v359 = vld [vmem:[%s333 + $0xb8] sm:$0xff]
        %v360 = vld [vmem:[%s333 + $0xc0] sm:$0xff]
        %v361 = vld [vmem:[%s333 + $0xc8] sm:$0xff]
        %v362 = vld [vmem:[%s333 + $0xd0] sm:$0xff]
        %v363 = vld [vmem:[%s333 + $0xd8] sm:$0xff]
        %v364 = vld [vmem:[%s333 + $0xe0] sm:$0xff]
        %v365 = vld [vmem:[%s333 + $0xe8] sm:$0xff]
        %v366 = vld [vmem:[%s333 + $0xf0] sm:$0xff]
        %v367 = vld [vmem:[%s333 + $0xf8] sm:$0xff]
        %v368 = vld [vmem:[%s1] sm:$0xff]
        %v369 = vld [vmem:[%s1 + $0x8] sm:$0xff]
        %v370 = vld [vmem:[%s1 + $0x10] sm:$0xff]
        %v371 = vld [vmem:[%s1 + $0x18] sm:$0xff]
        %v372 = vld [vmem:[%s1 + $0x20] sm:$0xff]
        %v373 = vld [vmem:[%s1 + $0x28] sm:$0xff]
        %v374 = vld [vmem:[%s1 + $0x30] sm:$0xff]
        %v375 = vld [vmem:[%s1 + $0x38] sm:$0xff]
        %v376 = vld [vmem:[%s2] sm:$0xff]
        %v377 = vld [vmem:[%s2 + $0x8] sm:$0xff]
        %v378 = vld [vmem:[%s2 + $0x10] sm:$0xff]
        %v379 = vld [vmem:[%s2 + $0x18] sm:$0xff]
        %v380 = vld [vmem:[%s2 + $0x20] sm:$0xff]
        %v381 = vld [vmem:[%s2 + $0x28] sm:$0xff]
        %v382 = vld [vmem:[%s2 + $0x30] sm:$0xff]
        %v383 = vld [vmem:[%s2 + $0x38] sm:$0xff]
        %385 = vset.pattern.permute.xlu0 0
        %386 = vperm.xlu0 %385, %v376
        %v387 = vpop.permute.xlu0 %386
        %390 = vset.pattern.permute.xlu0 0
        %391 = vperm.xlu0 %390, %v377
        %v392 = vpop.permute.xlu0 %391
        %395 = vset.pattern.permute.xlu0 0
        %396 = vperm.xlu0 %395, %v378
        %v397 = vpop.permute.xlu0 %396
        %400 = vset.pattern.permute.xlu0 0
        %401 = vperm.xlu0 %400, %v379
        %v402 = vpop.permute.xlu0 %401
        %405 = vset.pattern.permute.xlu0 0
        %406 = vperm.xlu0 %405, %v380
        %v407 = vpop.permute.xlu0 %406
        %410 = vset.pattern.permute.xlu0 0
        %411 = vperm.xlu0 %410, %v381
        %v412 = vpop.permute.xlu0 %411
        %415 = vset.pattern.permute.xlu0 0
        %416 = vperm.xlu0 %415, %v382
        %v417 = vpop.permute.xlu0 %416
        %420 = vset.pattern.permute.xlu0 0
        %421 = vperm.xlu0 %420, %v383
        %v422 = vpop.permute.xlu0 %421
        %vm424 = vcmask 244736
        %v426 = vsel %vm424, %v368, 0
        %v429 = vsel %vm424, %v369, 0
        %v432 = vsel %vm424, %v370, 0
        %v435 = vsel %vm424, %v371, 0
        %v438 = vsel %vm424, %v372, 0
        %v441 = vsel %vm424, %v373, 0
        %v444 = vsel %vm424, %v374, 0
        %v447 = vsel %vm424, %v375, 0
        %v450 = vsel %vm424, %v336, 0
        %v453 = vsel %vm424, %v337, 0
        %v456 = vsel %vm424, %v338, 0
        %v459 = vsel %vm424, %v339, 0
        %v462 = vsel %vm424, %v340, 0
        %v465 = vsel %vm424, %v341, 0
        %v468 = vsel %vm424, %v342, 0
        %v471 = vsel %vm424, %v343, 0
        %v474 = vsel %vm424, %v344, 0
        %v477 = vsel %vm424, %v345, 0
        %v480 = vsel %vm424, %v346, 0
        %v483 = vsel %vm424, %v347, 0
        %v486 = vsel %vm424, %v348, 0
        %v489 = vsel %vm424, %v349, 0
        %v492 = vsel %vm424, %v350, 0
        %v495 = vsel %vm424, %v351, 0
        %v498 = vsel %vm424, %v352, 0
        %v501 = vsel %vm424, %v353, 0
        %v504 = vsel %vm424, %v354, 0
        %v507 = vsel %vm424, %v355, 0
        %v510 = vsel %vm424, %v356, 0
        %v513 = vsel %vm424, %v357, 0
        %v516 = vsel %vm424, %v358, 0
        %v519 = vsel %vm424, %v359, 0
        %v522 = vsel %vm424, %v360, 0
        %v525 = vsel %vm424, %v361, 0
        %v528 = vsel %vm424, %v362, 0
        %v531 = vsel %vm424, %v363, 0
        %v534 = vsel %vm424, %v364, 0
        %v537 = vsel %vm424, %v365, 0
        %v540 = vsel %vm424, %v366, 0
        %v543 = vsel %vm424, %v367, 0
        %545 = vmatprep.subr.mxu0 0.0
        %546 = vmatpush1.xpose.msra.mxu0 %v450
        %547 = vmatprep.subr.mxu0 0.0
        %548 = vmatpush1.xpose.msra.mxu0 %v453
        %549 = vmatprep.subr.mxu0 0.0
        %550 = vmatpush1.xpose.msra.mxu0 %v456
        %551 = vmatprep.subr.mxu0 0.0
        %552 = vmatpush1.xpose.msra.mxu0 %v459
        %553 = vmatprep.subr.mxu0 0.0
        %554 = vmatpush1.xpose.msra.mxu0 %v462
        %555 = vmatprep.subr.mxu0 0.0
        %556 = vmatpush1.xpose.msra.mxu0 %v465
        %557 = vmatprep.subr.mxu0 0.0
        %558 = vmatpush1.xpose.msra.mxu0 %v468
        %559 = vmatprep.subr.mxu0 0.0
        %560 = vmatpush1.xpose.msra.mxu0 %v471
        %561 = vmatprep.subr.mxu0 0.0
        %562 = vmatpush1.xpose.msra.mxu0 %v474
        %563 = vmatprep.subr.mxu0 0.0
        %564 = vmatpush1.xpose.msra.mxu0 %v477
        %565 = vmatprep.subr.mxu0 0.0
        %566 = vmatpush1.xpose.msra.mxu0 %v480
        %567 = vmatprep.subr.mxu0 0.0
        %568 = vmatpush1.xpose.msra.mxu0 %v483
        %569 = vmatprep.subr.mxu0 0.0
        %570 = vmatpush1.xpose.msra.mxu0 %v486
        %571 = vmatprep.subr.mxu0 0.0
        %572 = vmatpush1.xpose.msra.mxu0 %v489
        %573 = vmatprep.subr.mxu0 0.0
        %574 = vmatpush1.xpose.msra.mxu0 %v492
        %575 = vmatprep.subr.mxu0 0.0
        %576 = vmatpush1.xpose.msra.mxu0 %v495
        %577 = vmatprep.subr.mxu0 0.0
        %578 = vmatpush1.xpose.msra.mxu0 %v498
        %579 = vmatprep.subr.mxu0 0.0
        %580 = vmatpush1.xpose.msra.mxu0 %v501
        %581 = vmatprep.subr.mxu0 0.0
        %582 = vmatpush1.xpose.msra.mxu0 %v504
        %583 = vmatprep.subr.mxu0 0.0
        %584 = vmatpush1.xpose.msra.mxu0 %v507
        %585 = vmatprep.subr.mxu0 0.0
        %586 = vmatpush1.xpose.msra.mxu0 %v510
        %587 = vmatprep.subr.mxu0 0.0
        %588 = vmatpush1.xpose.msra.mxu0 %v513
        %589 = vmatprep.subr.mxu0 0.0
        %590 = vmatpush1.xpose.msra.mxu0 %v516
        %591 = vmatprep.subr.mxu0 0.0
        %592 = vmatpush1.xpose.msra.mxu0 %v519
        %593 = vmatprep.subr.mxu0 0.0
        %594 = vmatpush1.xpose.msra.mxu0 %v522
        %595 = vmatprep.subr.mxu0 0.0
        %596 = vmatpush1.xpose.msra.mxu0 %v525
        %597 = vmatprep.subr.mxu0 0.0
        %598 = vmatpush1.xpose.msra.mxu0 %v528
        %599 = vmatprep.subr.mxu0 0.0
        %600 = vmatpush1.xpose.msra.mxu0 %v531
        %601 = vmatprep.subr.mxu0 0.0
        %602 = vmatpush1.xpose.msra.mxu0 %v534
        %603 = vmatprep.subr.mxu0 0.0
        %604 = vmatpush1.xpose.msra.mxu0 %v537
        %605 = vmatprep.subr.mxu0 0.0
        %606 = vmatpush1.xpose.msra.mxu0 %v540
        %607 = vmatprep.subr.mxu0 0.0
        %608 = vmatpush1.xpose.msra.mxu0 %v543
        %609 = vmatprep.mubr.f32.mxu0 0.0
        %610 = vmatmul.mubr.f32.gmra.mrb[0].mxu0 %v426
        %v611 = vpop.f32.mrb[0].mxu0
        %v612 = vadd.f32 %v387, %v611
        %v613 = vpop.f32.mrb[0].mxu0
        %v614 = vadd.f32 %v387, %v613
        %615 = vmatprep.mubr.f32.mxu0 0.0
        %616 = vmatmul.mubr.f32.gmra.mrb[0].mxu0 %v429
        %v617 = vpop.f32.mrb[0].mxu0
        %v618 = vadd.f32 %v392, %v617
        %v619 = vpop.f32.mrb[0].mxu0
        %v620 = vadd.f32 %v392, %v619
        %621 = vmatprep.mubr.f32.mxu0 0.0
        %622 = vmatmul.mubr.f32.gmra.mrb[0].mxu0 %v432
        %v623 = vpop.f32.mrb[0].mxu0
        %v624 = vadd.f32 %v397, %v623
        %v625 = vpop.f32.mrb[0].mxu0
        %v626 = vadd.f32 %v397, %v625
        %627 = vmatprep.mubr.f32.mxu0 0.0
        %628 = vmatmul.mubr.f32.gmra.mrb[0].mxu0 %v435
        %v629 = vpop.f32.mrb[0].mxu0
        %v630 = vadd.f32 %v402, %v629
        %v631 = vpop.f32.mrb[0].mxu0
        %v632 = vadd.f32 %v402, %v631
        %633 = vmatprep.mubr.f32.mxu0 0.0
        %634 = vmatmul.mubr.f32.gmra.mrb[0].mxu0 %v438
        %v635 = vpop.f32.mrb[0].mxu0
        %v636 = vadd.f32 %v407, %v635
        %v637 = vpop.f32.mrb[0].mxu0
        %v638 = vadd.f32 %v407, %v637
        %639 = vmatprep.mubr.f32.mxu0 0.0
        %640 = vmatmul.mubr.f32.gmra.mrb[0].mxu0 %v441
        %v641 = vpop.f32.mrb[0].mxu0
        %v642 = vadd.f32 %v412, %v641
        %v643 = vpop.f32.mrb[0].mxu0
        %v644 = vadd.f32 %v412, %v643
        %645 = vmatprep.mubr.f32.mxu0 0.0
        %646 = vmatmul.mubr.f32.gmra.mrb[0].mxu0 %v444
        %v647 = vpop.f32.mrb[0].mxu0
        %v648 = vadd.f32 %v417, %v647
        %v649 = vpop.f32.mrb[0].mxu0
        %v650 = vadd.f32 %v417, %v649
        %651 = vmatprep.mubr.f32.mxu0 0.0
        %652 = vmatmul.mubr.f32.gmra.mrb[0].mxu0 %v447
        %v653 = vpop.f32.mrb[0].mxu0
        %v654 = vadd.f32 %v422, %v653
        %v655 = vpop.f32.mrb[0].mxu0
        %v656 = vadd.f32 %v422, %v655
        %657 = vdwg.mxu0
        %v658 = vmax.f32 %v612, 0.0
        %v659 = vmax.f32 %v614, 0.0
        %v660 = vmax.f32 %v618, 0.0
        %v661 = vmax.f32 %v620, 0.0
        %v662 = vmax.f32 %v624, 0.0
        %v663 = vmax.f32 %v626, 0.0
        %v664 = vmax.f32 %v630, 0.0
        %v665 = vmax.f32 %v632, 0.0
        %v666 = vmax.f32 %v636, 0.0
        %v667 = vmax.f32 %v638, 0.0
        %v668 = vmax.f32 %v642, 0.0
        %v669 = vmax.f32 %v644, 0.0
        %v670 = vmax.f32 %v648, 0.0
        %v671 = vmax.f32 %v650, 0.0
        %v672 = vmax.f32 %v654, 0.0
        %v673 = vmax.f32 %v656, 0.0
        %v674 = vld [vmem:[%s3] sm:$0xff]
        %v675 = vld [vmem:[%s3 + $0x8] sm:$0xff]
        %v676 = vld [vmem:[%s3 + $0x10] sm:$0xff]
        %v677 = vld [vmem:[%s3 + $0x18] sm:$0xff]
        %v678 = vld [vmem:[%s4] sm:$0xff]
        %v679 = vld [vmem:[%s4 + $0x8] sm:$0xff]
        %v680 = vld [vmem:[%s4 + $0x10] sm:$0xff]
        %v681 = vld [vmem:[%s4 + $0x18] sm:$0xff]
        %683 = vset.pattern.permute.xlu0 0
        %684 = vperm.xlu0 %683, %v678
        %v685 = vpop.permute.xlu0 %684
        %688 = vset.pattern.permute.xlu0 0
        %689 = vperm.xlu0 %688, %v679
        %v690 = vpop.permute.xlu0 %689
        %693 = vset.pattern.permute.xlu0 0
        %694 = vperm.xlu0 %693, %v680
        %v695 = vpop.permute.xlu0 %694
        %698 = vset.pattern.permute.xlu0 0
        %699 = vperm.xlu0 %698, %v681
        %v700 = vpop.permute.xlu0 %699
        %vm702 = vcmask 523264
        %v704 = vsel %vm702, %v674, 0
        %v707 = vsel %vm702, %v675, 0
        %v710 = vsel %vm702, %v676, 0
        %v713 = vsel %vm702, %v677, 0
        %715 = vmatprep.subr.mxu0 %v659
        %716 = vmatpush1.msra.mxu0 %v658
        %717 = vmatprep.subr.mxu0 %v661
        %718 = vmatpush1.msra.mxu0 %v660
        %719 = vmatprep.subr.mxu0 %v663
        %720 = vmatpush1.msra.mxu0 %v662
        %721 = vmatprep.subr.mxu0 %v665
        %722 = vmatpush1.msra.mxu0 %v664
        %723 = vmatprep.subr.mxu0 %v667
        %724 = vmatpush1.msra.mxu0 %v666
        %725 = vmatprep.subr.mxu0 %v669
        %726 = vmatpush1.msra.mxu0 %v668
        %727 = vmatprep.subr.mxu0 %v671
        %728 = vmatpush1.msra.mxu0 %v670
        %729 = vmatprep.subr.mxu0 %v673
        %730 = vmatpush1.msra.mxu0 %v672
        %731 = vmatprep.subr.mxu0 0.0
        %732 = vmatpush1.msra.mxu0 0.0
        %733 = vmatprep.subr.mxu0 0.0
        %734 = vmatpush1.msra.mxu0 0.0
        %735 = vmatprep.subr.mxu0 0.0
        %736 = vmatpush1.msra.mxu0 0.0
        %737 = vmatprep.subr.mxu0 0.0
        %738 = vmatpush1.msra.mxu0 0.0
        %739 = vmatprep.subr.mxu0 0.0
        %740 = vmatpush1.msra.mxu0 0.0
        %741 = vmatprep.subr.mxu0 0.0
        %742 = vmatpush1.msra.mxu0 0.0
        %743 = vmatprep.subr.mxu0 0.0
        %744 = vmatpush1.msra.mxu0 0.0
        %745 = vmatprep.subr.mxu0 0.0
        %746 = vmatpush1.msra.mxu0 0.0
        %747 = vmatprep.subr.mxu0 0.0
        %748 = vmatpush1.msra.mxu0 0.0
        %749 = vmatprep.subr.mxu0 0.0
        %750 = vmatpush1.msra.mxu0 0.0
        %751 = vmatprep.subr.mxu0 0.0
        %752 = vmatpush1.msra.mxu0 0.0
        %753 = vmatprep.subr.mxu0 0.0
        %754 = vmatpush1.msra.mxu0 0.0
        %755 = vmatprep.subr.mxu0 0.0
        %756 = vmatpush1.msra.mxu0 0.0
        %757 = vmatprep.subr.mxu0 0.0
        %758 = vmatpush1.msra.mxu0 0.0
        %759 = vmatprep.subr.mxu0 0.0
        %760 = vmatpush1.msra.mxu0 0.0
        %761 = vmatprep.subr.mxu0 0.0
        %762 = vmatpush1.msra.mxu0 0.0
        %763 = vmatprep.subr.mxu0 0.0
        %764 = vmatpush1.msra.mxu0 0.0
        %765 = vmatprep.subr.mxu0 0.0
        %766 = vmatpush1.msra.mxu0 0.0
        %767 = vmatprep.subr.mxu0 0.0
        %768 = vmatpush1.msra.mxu0 0.0
        %769 = vmatprep.subr.mxu0 0.0
        %770 = vmatpush1.msra.mxu0 0.0
        %771 = vmatprep.subr.mxu0 0.0
        %772 = vmatpush1.msra.mxu0 0.0
        %773 = vmatprep.subr.mxu0 0.0
        %774 = vmatpush1.msra.mxu0 0.0
        %775 = vmatprep.subr.mxu0 0.0
        %776 = vmatpush1.msra.mxu0 0.0
        %777 = vmatprep.subr.mxu0 0.0
        %778 = vmatpush1.msra.mxu0 0.0
        %779 = vmatprep.mubr.f32.mxu0 0.0
        %780 = vmatmul.mubr.f32.gmra.mrb[0].mxu0 %v704
        %v781 = vpop.f32.mrb[0].mxu0
        %v782 = vadd.f32 %v685, %v781
        %v783 = vpop.f32.mrb[0].mxu0
        %v784 = vadd.f32 %v685, %v783
        %785 = vmatprep.mubr.f32.mxu0 0.0
        %786 = vmatmul.mubr.f32.gmra.mrb[0].mxu0 %v707
        %v787 = vpop.f32.mrb[0].mxu0
        %v788 = vadd.f32 %v690, %v787
        %v789 = vpop.f32.mrb[0].mxu0
        %v790 = vadd.f32 %v690, %v789
        %791 = vmatprep.mubr.f32.mxu0 0.0
        %792 = vmatmul.mubr.f32.gmra.mrb[0].mxu0 %v710
        %v793 = vpop.f32.mrb[0].mxu0
        %v794 = vadd.f32 %v695, %v793
        %v795 = vpop.f32.mrb[0].mxu0
        %v796 = vadd.f32 %v695, %v795
        %797 = vmatprep.mubr.f32.mxu0 0.0
        %798 = vmatmul.mubr.f32.gmra.mrb[0].mxu0 %v713
        %v799 = vpop.f32.mrb[0].mxu0
        %v800 = vadd.f32 %v700, %v799
        %v801 = vpop.f32.mrb[0].mxu0
        %v802 = vadd.f32 %v700, %v801
        %803 = vdwg.mxu0
        %v804 = vmax.f32 %v782, 0.0
        %v805 = vmax.f32 %v784, 0.0
        %v806 = vmax.f32 %v788, 0.0
        %v807 = vmax.f32 %v790, 0.0
        %v808 = vmax.f32 %v794, 0.0
        %v809 = vmax.f32 %v796, 0.0
        %v810 = vmax.f32 %v800, 0.0
        %v811 = vmax.f32 %v802, 0.0
        %v812 = vld [vmem:[%s5] sm:$0xff]
        %v813 = vld [vmem:[%s5 + $0x8] sm:$0xff]
        %v814 = vld [vmem:[%s6] sm:$0xff]
        %v815 = vld [vmem:[%s6 + $0x8] sm:$0xff]
        %817 = vset.pattern.permute.xlu0 0
        %818 = vperm.xlu0 %817, %v814
        %v819 = vpop.permute.xlu0 %818
        %822 = vset.pattern.permute.xlu0 0
        %823 = vperm.xlu0 %822, %v815
        %v824 = vpop.permute.xlu0 %823
        %vm826 = vcmask 261120
        %v828 = vsel %vm826, %v812, 0
        %v831 = vsel %vm826, %v813, 0
        %833 = vmatprep.subr.mxu0 %v805
        %834 = vmatpush1.msra.mxu0 %v804
        %835 = vmatprep.subr.mxu0 %v807
        %836 = vmatpush1.msra.mxu0 %v806
        %837 = vmatprep.subr.mxu0 %v809
        %838 = vmatpush1.msra.mxu0 %v808
        %839 = vmatprep.subr.mxu0 %v811
        %840 = vmatpush1.msra.mxu0 %v810
        %841 = vmatprep.subr.mxu0 0.0
        %842 = vmatpush1.msra.mxu0 0.0
        %843 = vmatprep.subr.mxu0 0.0
        %844 = vmatpush1.msra.mxu0 0.0
        %845 = vmatprep.subr.mxu0 0.0
        %846 = vmatpush1.msra.mxu0 0.0
        %847 = vmatprep.subr.mxu0 0.0
        %848 = vmatpush1.msra.mxu0 0.0
        %849 = vmatprep.subr.mxu0 0.0
        %850 = vmatpush1.msra.mxu0 0.0
        %851 = vmatprep.subr.mxu0 0.0
        %852 = vmatpush1.msra.mxu0 0.0
        %853 = vmatprep.subr.mxu0 0.0
        %854 = vmatpush1.msra.mxu0 0.0
        %855 = vmatprep.subr.mxu0 0.0
        %856 = vmatpush1.msra.mxu0 0.0
        %857 = vmatprep.subr.mxu0 0.0
        %858 = vmatpush1.msra.mxu0 0.0
        %859 = vmatprep.subr.mxu0 0.0
        %860 = vmatpush1.msra.mxu0 0.0
        %861 = vmatprep.subr.mxu0 0.0
        %862 = vmatpush1.msra.mxu0 0.0
        %863 = vmatprep.subr.mxu0 0.0
        %864 = vmatpush1.msra.mxu0 0.0
        %865 = vmatprep.subr.mxu0 0.0
        %866 = vmatpush1.msra.mxu0 0.0
        %867 = vmatprep.subr.mxu0 0.0
        %868 = vmatpush1.msra.mxu0 0.0
        %869 = vmatprep.subr.mxu0 0.0
        %870 = vmatpush1.msra.mxu0 0.0
        %871 = vmatprep.subr.mxu0 0.0
        %872 = vmatpush1.msra.mxu0 0.0
        %873 = vmatprep.subr.mxu0 0.0
        %874 = vmatpush1.msra.mxu0 0.0
        %875 = vmatprep.subr.mxu0 0.0
        %876 = vmatpush1.msra.mxu0 0.0
        %877 = vmatprep.subr.mxu0 0.0
        %878 = vmatpush1.msra.mxu0 0.0
        %879 = vmatprep.subr.mxu0 0.0
        %880 = vmatpush1.msra.mxu0 0.0
        %881 = vmatprep.subr.mxu0 0.0
        %882 = vmatpush1.msra.mxu0 0.0
        %883 = vmatprep.subr.mxu0 0.0
        %884 = vmatpush1.msra.mxu0 0.0
        %885 = vmatprep.subr.mxu0 0.0
        %886 = vmatpush1.msra.mxu0 0.0
        %887 = vmatprep.subr.mxu0 0.0
        %888 = vmatpush1.msra.mxu0 0.0
        %889 = vmatprep.subr.mxu0 0.0
        %890 = vmatpush1.msra.mxu0 0.0
        %891 = vmatprep.subr.mxu0 0.0
        %892 = vmatpush1.msra.mxu0 0.0
        %893 = vmatprep.subr.mxu0 0.0
        %894 = vmatpush1.msra.mxu0 0.0
        %895 = vmatprep.subr.mxu0 0.0
        %896 = vmatpush1.msra.mxu0 0.0
        %897 = vmatprep.mubr.f32.mxu0 0.0
        %898 = vmatmul.mubr.f32.gmra.mrb[0].mxu0 %v828
        %v899 = vpop.f32.mrb[0].mxu0
        %v900 = vadd.f32 %v819, %v899
        %v901 = vpop.f32.mrb[0].mxu0
        %v902 = vadd.f32 %v819, %v901
        %903 = vmatprep.mubr.f32.mxu0 0.0
        %904 = vmatmul.mubr.f32.gmra.mrb[0].mxu0 %v831
        %v905 = vpop.f32.mrb[0].mxu0
        %v906 = vadd.f32 %v824, %v905
        %v907 = vpop.f32.mrb[0].mxu0
        %v908 = vadd.f32 %v824, %v907
        %909 = vdwg.mxu0
        %v910 = vmax.f32 %v900, 0.0
        %v911 = vmax.f32 %v902, 0.0
        %v912 = vmax.f32 %v906, 0.0
        %v913 = vmax.f32 %v908, 0.0
        %v914 = vld [vmem:[%s7] sm:$0x1]
        %v915 = vld [vmem:[#allocation2] sm:$0x1]
        %917 = vset.pattern.permute.xlu0 0
        %918 = vperm.xlu0 %917, %v915
        %v919 = vpop.permute.xlu0 %918
        %v921 = vlaneseq
        %v922 = vshrl.u32 %v921, 7
        %v923 = vsub.s32 0, %v922
        %v924 = vrot.slane %v919, %v923
        %vm925 = vcmask 130048
        %v927 = vsel %vm925, %v914, 0
        %929 = vmatprep.subr.mxu0 %v911
        %930 = vmatpush1.msra.mxu0 %v910
        %931 = vmatprep.subr.mxu0 %v913
        %932 = vmatpush1.msra.mxu0 %v912
        %933 = vmatprep.subr.mxu0 0.0
        %934 = vmatpush1.msra.mxu0 0.0
        %935 = vmatprep.subr.mxu0 0.0
        %936 = vmatpush1.msra.mxu0 0.0
        %937 = vmatprep.subr.mxu0 0.0
        %938 = vmatpush1.msra.mxu0 0.0
        %939 = vmatprep.subr.mxu0 0.0
        %940 = vmatpush1.msra.mxu0 0.0
        %941 = vmatprep.subr.mxu0 0.0
        %942 = vmatpush1.msra.mxu0 0.0
        %943 = vmatprep.subr.mxu0 0.0
        %944 = vmatpush1.msra.mxu0 0.0
        %945 = vmatprep.subr.mxu0 0.0
        %946 = vmatpush1.msra.mxu0 0.0
        %947 = vmatprep.subr.mxu0 0.0
        %948 = vmatpush1.msra.mxu0 0.0
        %949 = vmatprep.subr.mxu0 0.0
        %950 = vmatpush1.msra.mxu0 0.0
        %951 = vmatprep.subr.mxu0 0.0
        %952 = vmatpush1.msra.mxu0 0.0
        %953 = vmatprep.subr.mxu0 0.0
        %954 = vmatpush1.msra.mxu0 0.0
        %955 = vmatprep.subr.mxu0 0.0
        %956 = vmatpush1.msra.mxu0 0.0
        %957 = vmatprep.subr.mxu0 0.0
        %958 = vmatpush1.msra.mxu0 0.0
        %959 = vmatprep.subr.mxu0 0.0
        %960 = vmatpush1.msra.mxu0 0.0
        %961 = vmatprep.subr.mxu0 0.0
        %962 = vmatpush1.msra.mxu0 0.0
        %963 = vmatprep.subr.mxu0 0.0
        %964 = vmatpush1.msra.mxu0 0.0
        %965 = vmatprep.subr.mxu0 0.0
        %966 = vmatpush1.msra.mxu0 0.0
        %967 = vmatprep.subr.mxu0 0.0
        %968 = vmatpush1.msra.mxu0 0.0
        %969 = vmatprep.subr.mxu0 0.0
        %970 = vmatpush1.msra.mxu0 0.0
        %971 = vmatprep.subr.mxu0 0.0
        %972 = vmatpush1.msra.mxu0 0.0
        %973 = vmatprep.subr.mxu0 0.0
        %974 = vmatpush1.msra.mxu0 0.0
        %975 = vmatprep.subr.mxu0 0.0
        %976 = vmatpush1.msra.mxu0 0.0
        %977 = vmatprep.subr.mxu0 0.0
        %978 = vmatpush1.msra.mxu0 0.0
        %979 = vmatprep.subr.mxu0 0.0
        %980 = vmatpush1.msra.mxu0 0.0
        %981 = vmatprep.subr.mxu0 0.0
        %982 = vmatpush1.msra.mxu0 0.0
        %983 = vmatprep.subr.mxu0 0.0
        %984 = vmatpush1.msra.mxu0 0.0
        %985 = vmatprep.subr.mxu0 0.0
        %986 = vmatpush1.msra.mxu0 0.0
        %987 = vmatprep.subr.mxu0 0.0
        %988 = vmatpush1.msra.mxu0 0.0
        %989 = vmatprep.subr.mxu0 0.0
        %990 = vmatpush1.msra.mxu0 0.0
        %991 = vmatprep.subr.mxu0 0.0
        %992 = vmatpush1.msra.mxu0 0.0
        %993 = vmatprep.mubr.f32.mxu0 0.0
        %994 = vmatmul.mubr.f32.gmra.mrb[0].mxu0 %v927
        %v995 = vpop.f32.mrb[0].mxu0
        %v996 = vadd.f32 %v924, %v995
        %v997 = vpop.f32.mrb[0].mxu0
        %v998 = vadd.f32 %v924, %v997
        %999 = vdwg.mxu0
        %v1000 = vsub.f32 0.0, %v996
        %v1001 = vsub.f32 0.0, %v998
        %v1002 = vmul.f32 %v1000, 1.442695
        %v1003 = vpow.pop %v1002
        %v1004 = vmul.f32 %v1001, 1.442695
        %v1005 = vpow.pop %v1004
        %v1006 = vadd.f32 %v1003, 1.0
        %v1007 = vadd.f32 %v1005, 1.0
        %v1008 = vrcp.pop %v1006
        %v1009 = vmul.f32 1.0, %v1008
        %v1010 = vrcp.pop %v1007
        %v1011 = vmul.f32 1.0, %v1010
        %v1014 = vcombine.low %v1009, %v1011
        %v1016 = vunpack.c.l.s4 1966171168
        %v1017 = vunpack.c.0.s8 %v1016
        %v1018 = vlaneseq
        %v1019 = vshrl.u32 %v1018, 7
        %v1020 = vsub.s32 %v1017, %v1019
        %v1021 = vrot.slane %v1014, %v1020
        %v1023 = vunpack.c.l.s4 1966171168
        %v1024 = vunpack.c.0.s8 %v1023
        %v1025 = vlaneseq
        %v1026 = vshrl.u32 %v1025, 7
        %v1027 = vsub.s32 %v1024, %v1026
        %v1028 = vrot.slane %v1021, %v1027
        %v1030 = vlaneseq
        %vm1031 = vcmp.ge.s32.totalorder %v1030, 0
        %vm1032 = vcmp.lt.s32.totalorder %v1030, 256
        %vm1033 = vmand %vm1031, %vm1032
        %1034 = vst.msk [vmem:[%s328] sm:$0x3] %vm1033, %v1028
        %s1035 = sand.u32 %s227, 1
        %s1036 = scalar_lea.sflag [#allocation4], %s1035
        %s1037 = sand.u32 %s227, 1
        %s1038 = smul.addr %s1037, 2
        %s1039 = scalar_lea.vmem [#allocation3], %s1038
        // Predicated region
        $region57: #{_lambda_.1} parent=55 // pred_check
          %p1040 = pneg %p237
        $region58: #{_lambda_.1} parent=55 // pred_check_branch
          %1042 = sbr.rel (%p1040) target = $region60
        $region59: #{_lambda_.1} parent=55 // pred_region
          %s1043 = smul.u32 2, %s25
          %s1045 = ssub.s32 32, 32
          %1046 = vsyncadd %s1036, %s1045
          %s1047 = smul.addr %s1043, 16
          %s1048 = scalar_lea.hbm %s9, %s1047
          %s1050 = sshll.u32 %s1039, 4
          %s1051 = int_to_ptr.vmem [resolvable:$true] %s1050
          %1053 = dma.vmem_to_hbm [thread:$0]  %s1051, 32, %s1048, %s1036
        $region60: #{_lambda_.1} parent=55 // pred_fallthru
          _
      $region56: #{_lambda_.1} parent=5 // pred_fallthru
        _
      %p1054 = scmp.le.s32.totalorder 2, %s20
      // Predicated region
      $region61: #{_lambda_.1} parent=5 // pred_check
        %p1055 = pneg %p1054
      $region62: #{_lambda_.1} parent=5 // pred_check_branch
        %1057 = sbr.rel (%p1055) target = $region64
      $region63: #{_lambda_.1} parent=5 // pred_region
        %s1058 = ssub.s32 %s20, 2
        // Predicated region
        $region65: #{_lambda_.1} parent=63 // pred_check
          %p1059 = pneg %p243
        $region66: #{_lambda_.1} parent=63 // pred_check_branch
          %1061 = sbr.rel (%p1059) target = $region68
        $region67: #{_lambda_.1} parent=63 // pred_region
          %s1062 = sand.u32 %s228, 1
          %s1063 = scalar_lea.sflag [#allocation4], %s1062
          %s1064 = sand.u32 %s228, 1
          %s1065 = smul.addr %s1064, 2
          %s1066 = scalar_lea.vmem [#allocation3], %s1065
          %1067 = dma.done %s1063, 32
        $region68: #{_lambda_.1} parent=63 // pred_fallthru
          _
      $region64: #{_lambda_.1} parent=5 // pred_fallthru
        _
    $region6: #{_lambda_.1} parent=1 // loop_footer
      %s24 = sadd.s32 1, %s20
    $region7: #{_lambda_.1} parent=1 // loop_footer_branch
      %19 = sbr.rel target = $region3
    $region8: #{_lambda_.1} parent=1 // loop_exit
      _
    %1068 = vsyncpa [#allocation4], 1
    %s1069 = scalar_lea.sflag [#allocation4], 1
    %1070 = vsyncpa %s1069, 1

</llo_original>
